<compile_context>
chip_gen: v5e
topology: v5e:2x2
jax: 0.10.0
libtpu: 0.0.40
codegen_flags: <defaults>
</compile_context>

<pallas_src>
import math
import functools

import jax
import jax.numpy as jnp
import numpy as np
from jax.experimental import pallas as pl
from jax.experimental.pallas import tpu as pltpu


def _cross_attn_kernel(x_ref, y_ref,
                       wq_ref, bq_ref,
                       wkv_ref, bkv_ref,
                       wo_ref, bo_ref,
                       o_ref,
                       k_scr, v_scr, attn_scr,
                       *, n_heads, d_head, d_embed, compute_dtype):
    """Grid = (batch, q_tile). K/V are projected once per batch element
    (q_tile == 0) into VMEM scratch and reused for every query tile."""
    qi = pl.program_id(1)

    # ---- Fused K/V projection (one wide MXU matmul), cached in VMEM scratch.
    @pl.when(qi == 0)
    def _():
        y = y_ref[0].astype(compute_dtype)                        # (Skv, d_cross)
        kv = jnp.dot(y, wkv_ref[...].astype(compute_dtype),
                     preferred_element_type=jnp.float32) + bkv_ref[...]
        k_scr[...] = kv[:, :d_embed]                              # (Skv, d_embed)
        v_scr[...] = kv[:, d_embed:]                              # (Skv, d_embed)

    # ---- Q projection (1/sqrt(d_head) already folded into wq/bq).
    x = x_ref[0].astype(compute_dtype)                            # (tq, d_embed)
    q = jnp.dot(x, wq_ref[...].astype(compute_dtype),
                preferred_element_type=jnp.float32) + bq_ref[...]
    k = k_scr[...]
    v = v_scr[...]

    # ---- Per-head attention (static unroll; n_heads is compile-time).
    # TODO(synk): a single head-batched dot_general would avoid the d_head-wide
    # lane slices below, but needs a (tq, H, d_head) relayout that Mosaic does
    # not lower reliably for d_head < 128; keep the robust 2-D per-head form.
    for h in range(n_heads):
        lo = h * d_head
        hi = lo + d_head
        qh = q[:, lo:hi]                                          # (tq,  d_head)
        kh = k[:, lo:hi]                                          # (Skv, d_head)
        vh = v[:, lo:hi]                                          # (Skv, d_head)

        # QK^T without an explicit transpose: contract on d_head of both sides.
        s = jax.lax.dot_general(
            qh.astype(compute_dtype), kh.astype(compute_dtype),
            dimension_numbers=(((1,), (1,)), ((), ())),
            preferred_element_type=jnp.float32)                   # (tq, Skv)

        # Numerically stable softmax, kept in f32; reciprocal uses the EUP.
        s = s - jnp.max(s, axis=-1, keepdims=True)
        p = jnp.exp(s)
        p = p * pl.reciprocal(jnp.sum(p, axis=-1, keepdims=True))

        oh = jnp.dot(p.astype(compute_dtype), vh.astype(compute_dtype),
                     preferred_element_type=jnp.float32)          # (tq, d_head)
        attn_scr[:, lo:hi] = oh

    # ---- Output projection: one wide matmul fed from contiguous scratch.
    out = jnp.dot(attn_scr[...].astype(compute_dtype),
                  wo_ref[...].astype(compute_dtype),
                  preferred_element_type=jnp.float32) + bo_ref[...]
    o_ref[0] = out.astype(o_ref.dtype)


def _pick_q_tile(seq_q):
    """Full sequence when small; otherwise the largest multiple-of-8 divisor
    capped at 256 to bound the per-step VMEM working set."""
    if seq_q <= 256:
        return seq_q
    for t in (256, 128, 64, 32, 16, 8):
        if seq_q % t == 0:
            return t
    return seq_q


@functools.partial(jax.jit, static_argnames=("n_heads", "compute_dtype"))
def cross_attention(x, y, params, *, n_heads, compute_dtype=jnp.float32):
    """x: (B, Sq, d_embed), y: (B, Skv, d_cross) -> (B, Sq, d_embed)."""
    B, Sq, d_embed = x.shape
    _, Skv, d_cross = y.shape
    d_head = d_embed // n_heads
    scale = 1.0 / math.sqrt(d_head)

    # Weight prep is done once under jit (constant-folded / fused by XLA, never
    # inside the kernel's hot path). PyTorch nn.Linear stores weight as (out, in).
    wq = params["wq"].T * scale                                   # scale folded into q proj
    bq = (params["bq"] * scale).reshape(1, d_embed)
    wkv = jnp.concatenate([params["wk"].T, params["wv"].T], axis=1)   # (d_cross, 2*d_embed)
    bkv = jnp.concatenate([params["bk"], params["bv"]]).reshape(1, 2 * d_embed)
    wo = params["wo"].T                                           # (d_embed, d_embed)
    bo = params["bo"].reshape(1, d_embed)

    tq = _pick_q_tile(Sq)
    n_q = Sq // tq

    kernel = functools.partial(_cross_attn_kernel, n_heads=n_heads,
                               d_head=d_head, d_embed=d_embed,
                               compute_dtype=compute_dtype)

    full = lambda shape: pl.BlockSpec(shape, lambda b, qi: (0,) * len(shape))

    itemsize = jnp.dtype(x.dtype).itemsize
    flops = 2 * B * (Sq * d_embed * d_embed            # q projection
                     + Skv * d_cross * 2 * d_embed     # fused k/v projection
                     + 2 * Sq * Skv * d_embed          # qk^T and pv
                     + Sq * d_embed * d_embed)         # output projection
    cost = pl.CostEstimate(
        flops=flops,
        transcendentals=B * n_heads * Sq * Skv,
        bytes_accessed=(x.size + y.size + B * Sq * d_embed) * itemsize
        + 4 * (wq.size + bq.size + wkv.size + bkv.size + wo.size + bo.size),
    )

    return pl.pallas_call(
        kernel,
        out_shape=jax.ShapeDtypeStruct((B, Sq, d_embed), x.dtype),
        grid_spec=pltpu.PrefetchScalarGridSpec(
            num_scalar_prefetch=0,
            grid=(B, n_q),
            in_specs=[
                pl.BlockSpec((1, tq, d_embed), lambda b, qi: (b, qi, 0)),   # x
                pl.BlockSpec((1, Skv, d_cross), lambda b, qi: (b, 0, 0)),   # y
                full(wq.shape), full(bq.shape),
                full(wkv.shape), full(bkv.shape),
                full(wo.shape), full(bo.shape),
            ],
            out_specs=pl.BlockSpec((1, tq, d_embed), lambda b, qi: (b, qi, 0)),
            scratch_shapes=[
                pltpu.VMEM((Skv, d_embed), jnp.float32),   # cached K
                pltpu.VMEM((Skv, d_embed), jnp.float32),   # cached V
                pltpu.VMEM((tq, d_embed), jnp.float32),    # per-tile head outputs
            ],
        ),
        compiler_params=pltpu.CompilerParams(
            dimension_semantics=("parallel", "arbitrary"),
            vmem_limit_bytes=48 * 1024 * 1024,   # ~25% headroom under v7x's 64 MiB
        ),
        cost_estimate=cost,
    )(x, y, wq, bq, wkv, bkv, wo, bo)


def _reference(x, y, params, *, n_heads):
    """Pure-JAX reference matching the PyTorch forward exactly."""
    B, Sq, d_embed = x.shape
    d_head = d_embed // n_heads
    q = x @ params["wq"].T + params["bq"]
    k = y @ params["wk"].T + params["bk"]
    v = y @ params["wv"].T + params["bv"]
    q = q.reshape(B, Sq, n_heads, d_head).transpose(0, 2, 1, 3)
    k = k.reshape(B, -1, n_heads, d_head).transpose(0, 2, 1, 3)
    v = v.reshape(B, -1, n_heads, d_head).transpose(0, 2, 1, 3)
    w = jnp.einsum("bhqd,bhkd->bhqk", q, k) / math.sqrt(d_head)
    w = jax.nn.softmax(w, axis=-1)
    o = jnp.einsum("bhqk,bhkd->bhqd", w, v)
    o = o.transpose(0, 2, 1, 3).reshape(B, Sq, d_embed)
    return o @ params["wo"].T + params["bo"]


if __name__ == "__main__":
    # Small shapes consistent with the module.
    B, Sq, Skv = 2, 16, 8
    n_heads, d_embed, d_cross = 4, 32, 24

    key = jax.random.PRNGKey(0)
    keys = jax.random.split(key, 10)

    def uinit(k, shape, fan_in):
        bound = 1.0 / math.sqrt(fan_in)
        return jax.random.uniform(k, shape, jnp.float32, -bound, bound)

    params = {
        "wq": uinit(keys[0], (d_embed, d_embed), d_embed),
        "bq": uinit(keys[1], (d_embed,), d_embed),
        "wk": uinit(keys[2], (d_embed, d_cross), d_cross),
        "bk": uinit(keys[3], (d_embed,), d_cross),
        "wv": uinit(keys[4], (d_embed, d_cross), d_cross),
        "bv": uinit(keys[5], (d_embed,), d_cross),
        "wo": uinit(keys[6], (d_embed, d_embed), d_embed),
        "bo": uinit(keys[7], (d_embed,), d_embed),
    }

    x = jax.random.normal(keys[8], (B, Sq, d_embed), jnp.float32)
    y = jax.random.normal(keys[9], (B, Skv, d_cross), jnp.float32)

    # f32 MXU operands here to hold the 1e-4 tolerance; pass
    # compute_dtype=jnp.bfloat16 for peak MXU throughput on v6e/v7x
    # (softmax stays in f32 either way).
    out = cross_attention(x, y, params, n_heads=n_heads)
    out = jax.block_until_ready(out)

    ref = _reference(x, y, params, n_heads=n_heads)
    np.testing.assert_allclose(np.asarray(out), np.asarray(ref), atol=1e-4, rtol=1e-4)

    print("KERNEL_OK")
</pallas_src>

<mosaic_0001>
module attributes {stable_mosaic.version = 11 : i64} {
  func.func @_cross_attn_kernel(%arg0: i32, %arg1: i32, %arg2: memref<1x16x32xf32, #tpu.memory_space<vmem>>, %arg3: memref<1x8x24xf32, #tpu.memory_space<vmem>>, %arg4: memref<32x32xf32, #tpu.memory_space<vmem>>, %arg5: memref<1x32xf32, #tpu.memory_space<vmem>>, %arg6: memref<24x64xf32, #tpu.memory_space<vmem>>, %arg7: memref<1x64xf32, #tpu.memory_space<vmem>>, %arg8: memref<32x32xf32, #tpu.memory_space<vmem>>, %arg9: memref<1x32xf32, #tpu.memory_space<vmem>>, %arg10: memref<1x16x32xf32, #tpu.memory_space<vmem>>, %arg11: memref<8x32xf32, #tpu.memory_space<vmem>>, %arg12: memref<8x32xf32, #tpu.memory_space<vmem>>, %arg13: memref<16x32xf32, #tpu.memory_space<vmem>>) attributes {dimension_semantics = [#tpu.dimension_semantics<parallel>, #tpu.dimension_semantics<arbitrary>], iteration_bounds = array<i64: 2, 1>, scalar_prefetch = 0 : i64, scratch_operands = 3 : i64, tpu.core_type = #tpu.core_type<tc>, window_params = [{transform_indices = @transform_0, window_bounds = array<i64: 1, 16, 32>}, {transform_indices = @transform_1, window_bounds = array<i64: 1, 8, 24>}, {pipeline_mode = #tpu.pipeline_mode<synchronous>, transform_indices = @transform_2, window_bounds = array<i64: 32, 32>}, {pipeline_mode = #tpu.pipeline_mode<synchronous>, transform_indices = @transform_3, window_bounds = array<i64: 1, 32>}, {pipeline_mode = #tpu.pipeline_mode<synchronous>, transform_indices = @transform_4, window_bounds = array<i64: 24, 64>}, {pipeline_mode = #tpu.pipeline_mode<synchronous>, transform_indices = @transform_5, window_bounds = array<i64: 1, 64>}, {pipeline_mode = #tpu.pipeline_mode<synchronous>, transform_indices = @transform_6, window_bounds = array<i64: 32, 32>}, {pipeline_mode = #tpu.pipeline_mode<synchronous>, transform_indices = @transform_7, window_bounds = array<i64: 1, 32>}, {transform_indices = @transform_8, window_bounds = array<i64: 1, 16, 32>}]} {
    %c0_i32 = arith.constant 0 : i32
    %0 = arith.cmpi eq, %arg1, %c0_i32 : i32
    %1 = arith.extui %0 : i1 to i32
    %c0_i32_0 = arith.constant 0 : i32
    %2 = arith.cmpi ne, %1, %c0_i32_0 : i32
    scf.if %2 {
      %c0_42 = arith.constant 0 : index
      %c0_43 = arith.constant 0 : index
      %c0_44 = arith.constant 0 : index
      %85 = vector.load %arg3[%c0_42, %c0_43, %c0_44] : memref<1x8x24xf32, #tpu.memory_space<vmem>>, vector<1x8x24xf32>
      %86 = vector.shape_cast %85 : vector<1x8x24xf32> to vector<8x24xf32>
      %c0_45 = arith.constant 0 : index
      %c0_46 = arith.constant 0 : index
      %87 = vector.load %arg6[%c0_45, %c0_46] : memref<24x64xf32, #tpu.memory_space<vmem>>, vector<24x64xf32>
      %cst_47 = arith.constant dense<0.000000e+00> : vector<8x64xf32>
      %88 = tpu.matmul %86, %87, %cst_47 {dimension_numbers = #tpu.dot_dimension_numbers<[1], [0], [0], [1], [0, 0, 1, 1], [], []>} : vector<8x24xf32>, vector<24x64xf32>, vector<8x64xf32> -> vector<8x64xf32>
      %c0_48 = arith.constant 0 : index
      %c0_49 = arith.constant 0 : index
      %89 = vector.load %arg7[%c0_48, %c0_49] : memref<1x64xf32, #tpu.memory_space<vmem>>, vector<1x64xf32>
      %90 = vector.broadcast %89 : vector<1x64xf32> to vector<8x64xf32>
      %91 = arith.addf %88, %90 : vector<8x64xf32>
      %92 = vector.extract_strided_slice %91 {offsets = [0, 0], sizes = [8, 32], strides = [1, 1]} : vector<8x64xf32> to vector<8x32xf32>
      %c0_50 = arith.constant 0 : index
      %c0_51 = arith.constant 0 : index
      %93 = vector.load %arg11[%c0_50, %c0_51] : memref<8x32xf32, #tpu.memory_space<vmem>>, vector<8x32xf32>
      tpu.vector_store %arg11[%c0_50, %c0_51], %92 {strides = array<i32>} : memref<8x32xf32, #tpu.memory_space<vmem>>, vector<8x32xf32>,
      %94 = vector.extract_strided_slice %91 {offsets = [0, 32], sizes = [8, 32], strides = [1, 1]} : vector<8x64xf32> to vector<8x32xf32>
      %c0_52 = arith.constant 0 : index
      %c0_53 = arith.constant 0 : index
      %95 = vector.load %arg12[%c0_52, %c0_53] : memref<8x32xf32, #tpu.memory_space<vmem>>, vector<8x32xf32>
      tpu.vector_store %arg12[%c0_52, %c0_53], %94 {strides = array<i32>} : memref<8x32xf32, #tpu.memory_space<vmem>>, vector<8x32xf32>,
    } else {
    }
    %c0 = arith.constant 0 : index
    %c0_1 = arith.constant 0 : index
    %c0_2 = arith.constant 0 : index
    %3 = vector.load %arg2[%c0, %c0_1, %c0_2] : memref<1x16x32xf32, #tpu.memory_space<vmem>>, vector<1x16x32xf32>
    %4 = vector.shape_cast %3 : vector<1x16x32xf32> to vector<16x32xf32>
    %c0_3 = arith.constant 0 : index
    %c0_4 = arith.constant 0 : index
    %5 = vector.load %arg4[%c0_3, %c0_4] : memref<32x32xf32, #tpu.memory_space<vmem>>, vector<32x32xf32>
    %cst = arith.constant dense<0.000000e+00> : vector<16x32xf32>
    %6 = tpu.matmul %4, %5, %cst {dimension_numbers = #tpu.dot_dimension_numbers<[1], [0], [0], [1], [0, 0, 1, 1], [], []>} : vector<16x32xf32>, vector<32x32xf32>, vector<16x32xf32> -> vector<16x32xf32>
    %c0_5 = arith.constant 0 : index
    %c0_6 = arith.constant 0 : index
    %7 = vector.load %arg5[%c0_5, %c0_6] : memref<1x32xf32, #tpu.memory_space<vmem>>, vector<1x32xf32>
    %8 = vector.broadcast %7 : vector<1x32xf32> to vector<16x32xf32>
    %9 = arith.addf %6, %8 : vector<16x32xf32>
    %c0_7 = arith.constant 0 : index
    %c0_8 = arith.constant 0 : index
    %10 = vector.load %arg11[%c0_7, %c0_8] : memref<8x32xf32, #tpu.memory_space<vmem>>, vector<8x32xf32>
    %c0_9 = arith.constant 0 : index
    %c0_10 = arith.constant 0 : index
    %11 = vector.load %arg12[%c0_9, %c0_10] : memref<8x32xf32, #tpu.memory_space<vmem>>, vector<8x32xf32>
    %12 = vector.extract_strided_slice %9 {offsets = [0, 0], sizes = [16, 8], strides = [1, 1]} : vector<16x32xf32> to vector<16x8xf32>
    %13 = vector.extract_strided_slice %10 {offsets = [0, 0], sizes = [8, 8], strides = [1, 1]} : vector<8x32xf32> to vector<8x8xf32>
    %14 = vector.extract_strided_slice %11 {offsets = [0, 0], sizes = [8, 8], strides = [1, 1]} : vector<8x32xf32> to vector<8x8xf32>
    %cst_11 = arith.constant dense<0.000000e+00> : vector<16x8xf32>
    %15 = tpu.matmul %12, %13, %cst_11 {dimension_numbers = #tpu.dot_dimension_numbers<[1], [1], [0], [0], [0, 0, 1, 0], [], []>} : vector<16x8xf32>, vector<8x8xf32>, vector<16x8xf32> -> vector<16x8xf32>
    %cst_12 = arith.constant dense<0xFF800000> : vector<16xf32>
    %16 = vector.multi_reduction <maximumf>, %15, %cst_12 [1] : vector<16x8xf32> to vector<16xf32>
    %17 = vector.shape_cast %16 : vector<16xf32> to vector<16x1xf32>
    %18 = vector.broadcast %17 : vector<16x1xf32> to vector<16x8xf32>
    %19 = arith.subf %15, %18 : vector<16x8xf32>
    %20 = math.exp %19 : vector<16x8xf32>
    %cst_13 = arith.constant dense<0.000000e+00> : vector<16xf32>
    %21 = vector.multi_reduction <add>, %20, %cst_13 [1] : vector<16x8xf32> to vector<16xf32>
    %22 = vector.shape_cast %21 : vector<16xf32> to vector<16x1xf32>
    %23 = tpu.reciprocal %22 : vector<16x1xf32> -> vector<16x1xf32>
    %24 = vector.broadcast %23 : vector<16x1xf32> to vector<16x8xf32>
    %25 = arith.mulf %20, %24 : vector<16x8xf32>
    %cst_14 = arith.constant dense<0.000000e+00> : vector<16x8xf32>
    %26 = tpu.matmul %25, %14, %cst_14 {dimension_numbers = #tpu.dot_dimension_numbers<[1], [0], [0], [1], [0, 0, 1, 1], [], []>} : vector<16x8xf32>, vector<8x8xf32>, vector<16x8xf32> -> vector<16x8xf32>
    %c0_15 = arith.constant 0 : index
    %c0_16 = arith.constant 0 : index
    %27 = vector.load %arg13[%c0_15, %c0_16] : memref<16x32xf32, #tpu.memory_space<vmem>>, vector<16x8xf32>
    tpu.vector_store %arg13[%c0_15, %c0_16], %26 {strides = array<i32>} : memref<16x32xf32, #tpu.memory_space<vmem>>, vector<16x8xf32>,
    %28 = vector.extract_strided_slice %9 {offsets = [0, 8], sizes = [16, 8], strides = [1, 1]} : vector<16x32xf32> to vector<16x8xf32>
    %29 = vector.extract_strided_slice %10 {offsets = [0, 8], sizes = [8, 8], strides = [1, 1]} : vector<8x32xf32> to vector<8x8xf32>
    %30 = vector.extract_strided_slice %11 {offsets = [0, 8], sizes = [8, 8], strides = [1, 1]} : vector<8x32xf32> to vector<8x8xf32>
    %cst_17 = arith.constant dense<0.000000e+00> : vector<16x8xf32>
    %31 = tpu.matmul %28, %29, %cst_17 {dimension_numbers = #tpu.dot_dimension_numbers<[1], [1], [0], [0], [0, 0, 1, 0], [], []>} : vector<16x8xf32>, vector<8x8xf32>, vector<16x8xf32> -> vector<16x8xf32>
    %cst_18 = arith.constant dense<0xFF800000> : vector<16xf32>
    %32 = vector.multi_reduction <maximumf>, %31, %cst_18 [1] : vector<16x8xf32> to vector<16xf32>
    %33 = vector.shape_cast %32 : vector<16xf32> to vector<16x1xf32>
    %34 = vector.broadcast %33 : vector<16x1xf32> to vector<16x8xf32>
    %35 = arith.subf %31, %34 : vector<16x8xf32>
    %36 = math.exp %35 : vector<16x8xf32>
    %cst_19 = arith.constant dense<0.000000e+00> : vector<16xf32>
    %37 = vector.multi_reduction <add>, %36, %cst_19 [1] : vector<16x8xf32> to vector<16xf32>
    %38 = vector.shape_cast %37 : vector<16xf32> to vector<16x1xf32>
    %39 = tpu.reciprocal %38 : vector<16x1xf32> -> vector<16x1xf32>
    %40 = vector.broadcast %39 : vector<16x1xf32> to vector<16x8xf32>
    %41 = arith.mulf %36, %40 : vector<16x8xf32>
    %cst_20 = arith.constant dense<0.000000e+00> : vector<16x8xf32>
    %42 = tpu.matmul %41, %30, %cst_20 {dimension_numbers = #tpu.dot_dimension_numbers<[1], [0], [0], [1], [0, 0, 1, 1], [], []>} : vector<16x8xf32>, vector<8x8xf32>, vector<16x8xf32> -> vector<16x8xf32>
    %c0_21 = arith.constant 0 : index
    %c8 = arith.constant 8 : index
    %43 = vector.load %arg13[%c0_21, %c8] : memref<16x32xf32, #tpu.memory_space<vmem>>, vector<16x8xf32>
    tpu.vector_store %arg13[%c0_21, %c8], %42 {strides = array<i32>} : memref<16x32xf32, #tpu.memory_space<vmem>>, vector<16x8xf32>,
    %44 = vector.extract_strided_slice %9 {offsets = [0, 16], sizes = [16, 8], strides = [1, 1]} : vector<16x32xf32> to vector<16x8xf32>
    %45 = vector.extract_strided_slice %10 {offsets = [0, 16], sizes = [8, 8], strides = [1, 1]} : vector<8x32xf32> to vector<8x8xf32>
    %46 = vector.extract_strided_slice %11 {offsets = [0, 16], sizes = [8, 8], strides = [1, 1]} : vector<8x32xf32> to vector<8x8xf32>
    %cst_22 = arith.constant dense<0.000000e+00> : vector<16x8xf32>
    %47 = tpu.matmul %44, %45, %cst_22 {dimension_numbers = #tpu.dot_dimension_numbers<[1], [1], [0], [0], [0, 0, 1, 0], [], []>} : vector<16x8xf32>, vector<8x8xf32>, vector<16x8xf32> -> vector<16x8xf32>
    %cst_23 = arith.constant dense<0xFF800000> : vector<16xf32>
    %48 = vector.multi_reduction <maximumf>, %47, %cst_23 [1] : vector<16x8xf32> to vector<16xf32>
    %49 = vector.shape_cast %48 : vector<16xf32> to vector<16x1xf32>
    %50 = vector.broadcast %49 : vector<16x1xf32> to vector<16x8xf32>
    %51 = arith.subf %47, %50 : vector<16x8xf32>
    %52 = math.exp %51 : vector<16x8xf32>
    %cst_24 = arith.constant dense<0.000000e+00> : vector<16xf32>
    %53 = vector.multi_reduction <add>, %52, %cst_24 [1] : vector<16x8xf32> to vector<16xf32>
    %54 = vector.shape_cast %53 : vector<16xf32> to vector<16x1xf32>
    %55 = tpu.reciprocal %54 : vector<16x1xf32> -> vector<16x1xf32>
    %56 = vector.broadcast %55 : vector<16x1xf32> to vector<16x8xf32>
    %57 = arith.mulf %52, %56 : vector<16x8xf32>
    %cst_25 = arith.constant dense<0.000000e+00> : vector<16x8xf32>
    %58 = tpu.matmul %57, %46, %cst_25 {dimension_numbers = #tpu.dot_dimension_numbers<[1], [0], [0], [1], [0, 0, 1, 1], [], []>} : vector<16x8xf32>, vector<8x8xf32>, vector<16x8xf32> -> vector<16x8xf32>
    %c0_26 = arith.constant 0 : index
    %c16 = arith.constant 16 : index
    %59 = vector.load %arg13[%c0_26, %c16] : memref<16x32xf32, #tpu.memory_space<vmem>>, vector<16x8xf32>
    tpu.vector_store %arg13[%c0_26, %c16], %58 {strides = array<i32>} : memref<16x32xf32, #tpu.memory_space<vmem>>, vector<16x8xf32>,
    %60 = vector.extract_strided_slice %9 {offsets = [0, 24], sizes = [16, 8], strides = [1, 1]} : vector<16x32xf32> to vector<16x8xf32>
    %61 = vector.extract_strided_slice %10 {offsets = [0, 24], sizes = [8, 8], strides = [1, 1]} : vector<8x32xf32> to vector<8x8xf32>
    %62 = vector.extract_strided_slice %11 {offsets = [0, 24], sizes = [8, 8], strides = [1, 1]} : vector<8x32xf32> to vector<8x8xf32>
    %cst_27 = arith.constant dense<0.000000e+00> : vector<16x8xf32>
    %63 = tpu.matmul %60, %61, %cst_27 {dimension_numbers = #tpu.dot_dimension_numbers<[1], [1], [0], [0], [0, 0, 1, 0], [], []>} : vector<16x8xf32>, vector<8x8xf32>, vector<16x8xf32> -> vector<16x8xf32>
    %cst_28 = arith.constant dense<0xFF800000> : vector<16xf32>
    %64 = vector.multi_reduction <maximumf>, %63, %cst_28 [1] : vector<16x8xf32> to vector<16xf32>
    %65 = vector.shape_cast %64 : vector<16xf32> to vector<16x1xf32>
    %66 = vector.broadcast %65 : vector<16x1xf32> to vector<16x8xf32>
    %67 = arith.subf %63, %66 : vector<16x8xf32>
    %68 = math.exp %67 : vector<16x8xf32>
    %cst_29 = arith.constant dense<0.000000e+00> : vector<16xf32>
    %69 = vector.multi_reduction <add>, %68, %cst_29 [1] : vector<16x8xf32> to vector<16xf32>
    %70 = vector.shape_cast %69 : vector<16xf32> to vector<16x1xf32>
    %71 = tpu.reciprocal %70 : vector<16x1xf32> -> vector<16x1xf32>
    %72 = vector.broadcast %71 : vector<16x1xf32> to vector<16x8xf32>
    %73 = arith.mulf %68, %72 : vector<16x8xf32>
    %cst_30 = arith.constant dense<0.000000e+00> : vector<16x8xf32>
    %74 = tpu.matmul %73, %62, %cst_30 {dimension_numbers = #tpu.dot_dimension_numbers<[1], [0], [0], [1], [0, 0, 1, 1], [], []>} : vector<16x8xf32>, vector<8x8xf32>, vector<16x8xf32> -> vector<16x8xf32>
    %c0_31 = arith.constant 0 : index
    %c24 = arith.constant 24 : index
    %75 = vector.load %arg13[%c0_31, %c24] : memref<16x32xf32, #tpu.memory_space<vmem>>, vector<16x8xf32>
    tpu.vector_store %arg13[%c0_31, %c24], %74 {strides = array<i32>} : memref<16x32xf32, #tpu.memory_space<vmem>>, vector<16x8xf32>,
    %c0_32 = arith.constant 0 : index
    %c0_33 = arith.constant 0 : index
    %76 = vector.load %arg13[%c0_32, %c0_33] : memref<16x32xf32, #tpu.memory_space<vmem>>, vector<16x32xf32>
    %c0_34 = arith.constant 0 : index
    %c0_35 = arith.constant 0 : index
    %77 = vector.load %arg8[%c0_34, %c0_35] : memref<32x32xf32, #tpu.memory_space<vmem>>, vector<32x32xf32>
    %cst_36 = arith.constant dense<0.000000e+00> : vector<16x32xf32>
    %78 = tpu.matmul %76, %77, %cst_36 {dimension_numbers = #tpu.dot_dimension_numbers<[1], [0], [0], [1], [0, 0, 1, 1], [], []>} : vector<16x32xf32>, vector<32x32xf32>, vector<16x32xf32> -> vector<16x32xf32>
    %c0_37 = arith.constant 0 : index
    %c0_38 = arith.constant 0 : index
    %79 = vector.load %arg9[%c0_37, %c0_38] : memref<1x32xf32, #tpu.memory_space<vmem>>, vector<1x32xf32>
    %80 = vector.broadcast %79 : vector<1x32xf32> to vector<16x32xf32>
    %81 = arith.addf %78, %80 : vector<16x32xf32>
    %c0_39 = arith.constant 0 : index
    %c0_40 = arith.constant 0 : index
    %c0_41 = arith.constant 0 : index
    %82 = vector.load %arg10[%c0_39, %c0_40, %c0_41] : memref<1x16x32xf32, #tpu.memory_space<vmem>>, vector<1x16x32xf32>
    %83 = vector.shape_cast %82 : vector<1x16x32xf32> to vector<16x32xf32>
    %84 = vector.shape_cast %81 : vector<16x32xf32> to vector<1x16x32xf32>
    tpu.vector_store %arg10[%c0_39, %c0_40, %c0_41], %84 {strides = array<i32>} : memref<1x16x32xf32, #tpu.memory_space<vmem>>, vector<1x16x32xf32>,
    return
  }
  func.func @transform_0(%arg0: i32, %arg1: i32) -> (i32, i32, i32) {
    %c0_i32 = arith.constant 0 : i32
    %c0_i32_0 = arith.constant 0 : i32
    return %arg0, %arg1, %c0_i32 : i32, i32, i32
  }
  func.func @transform_1(%arg0: i32, %arg1: i32) -> (i32, i32, i32) {
    %c0_i32 = arith.constant 0 : i32
    %c0_i32_0 = arith.constant 0 : i32
    %c0_i32_1 = arith.constant 0 : i32
    return %arg0, %c0_i32, %c0_i32_0 : i32, i32, i32
  }
  func.func @transform_2(%arg0: i32, %arg1: i32) -> (i32, i32) {
    %c0_i32 = arith.constant 0 : i32
    %c0_i32_0 = arith.constant 0 : i32
    %c0_i32_1 = arith.constant 0 : i32
    return %c0_i32, %c0_i32_0 : i32, i32
  }
  func.func @transform_3(%arg0: i32, %arg1: i32) -> (i32, i32) {
    %c0_i32 = arith.constant 0 : i32
    %c0_i32_0 = arith.constant 0 : i32
    %c0_i32_1 = arith.constant 0 : i32
    return %c0_i32, %c0_i32_0 : i32, i32
  }
  func.func @transform_4(%arg0: i32, %arg1: i32) -> (i32, i32) {
    %c0_i32 = arith.constant 0 : i32
    %c0_i32_0 = arith.constant 0 : i32
    %c0_i32_1 = arith.constant 0 : i32
    return %c0_i32, %c0_i32_0 : i32, i32
  }
  func.func @transform_5(%arg0: i32, %arg1: i32) -> (i32, i32) {
    %c0_i32 = arith.constant 0 : i32
    %c0_i32_0 = arith.constant 0 : i32
    %c0_i32_1 = arith.constant 0 : i32
    return %c0_i32, %c0_i32_0 : i32, i32
  }
  func.func @transform_6(%arg0: i32, %arg1: i32) -> (i32, i32) {
    %c0_i32 = arith.constant 0 : i32
    %c0_i32_0 = arith.constant 0 : i32
    %c0_i32_1 = arith.constant 0 : i32
    return %c0_i32, %c0_i32_0 : i32, i32
  }
  func.func @transform_7(%arg0: i32, %arg1: i32) -> (i32, i32) {
    %c0_i32 = arith.constant 0 : i32
    %c0_i32_0 = arith.constant 0 : i32
    %c0_i32_1 = arith.constant 0 : i32
    return %c0_i32, %c0_i32_0 : i32, i32
  }
  func.func @transform_8(%arg0: i32, %arg1: i32) -> (i32, i32, i32) {
    %c0_i32 = arith.constant 0 : i32
    %c0_i32_0 = arith.constant 0 : i32
    return %arg0, %arg1, %c0_i32 : i32, i32, i32
  }
}

</mosaic_0001>

<llo_original>
// kernel: cross_attention.1
$region0: #{cross_attention.1}
  #allocation0 [shape = 'u32[]', space=smem, size = 0x4, offset = 0x4, fixed_abs, tag = 'smem constant byte address 0x4 - core index']
  #allocation1 [shape = 'u32[72,128]{1,0:T(1,128)}', space=vmem, size = 0x9000, scoped, tag = 'internal scratch']
  #allocation2 [shape = 'f32[8,32]{1,0:T(8,128)}', space=vmem, size = 0x1000, scoped, tag = 'scratch operand']
  #allocation3 [shape = 'f32[8,32]{1,0:T(8,128)}', space=vmem, size = 0x1000, scoped, tag = 'scratch operand']
  #allocation4 [shape = 'f32[16,32]{1,0:T(8,128)}', space=vmem, size = 0x2000, scoped, tag = 'scratch operand']
  %s0 = inlined_call_operand.vmem [shape: f32[2,16,32], index: 0, kind: input, shape index: {}]
  %s1 = inlined_call_operand.vmem [shape: f32[2,8,24], index: 1, kind: input, shape index: {}]
  %s2 = inlined_call_operand.vmem [shape: f32[32,32], index: 2, kind: input, shape index: {}]
  %s3 = inlined_call_operand.vmem [shape: f32[1,32], index: 3, kind: input, shape index: {}]
  %s4 = inlined_call_operand.vmem [shape: f32[24,64], index: 4, kind: input, shape index: {}]
  %s5 = inlined_call_operand.vmem [shape: f32[1,64], index: 5, kind: input, shape index: {}]
  %s6 = inlined_call_operand.vmem [shape: f32[32,32], index: 6, kind: input, shape index: {}]
  %s7 = inlined_call_operand.vmem [shape: f32[1,32], index: 7, kind: input, shape index: {}]
  %s8 = inlined_call_operand.hbm [shape: f32[2,16,32], index: 8, kind: output, shape index: {}]
  %s9 = sld [smem:[#allocation0]]
  $region69: #{cross_attention.1} parent=0
    _
  %s11 = ssub.s32 1, %s9
  %s12 = scalar_select 0, %s11, %s9
  $region1: #{cross_attention.1} parent=0
    #allocation5 [shape = 'u8[16384]{0}', space=vmem, size = 0x4000, scoped, tag = 'output window, operand 0']
    #allocation6 [shape = 's32[2]{0}', space=sflag, size = 0x8, scoped, tag = 'scoped memory for cross_attention.1']
    %13 = vsyncpa [#allocation6], 0
    %s14 = scalar_lea.sflag [#allocation6], 1
    %15 = vsyncpa %s14, 0
    loop: start=0, step=1, limit=4
    $region2: #{cross_attention.1} parent=1 // loop_pre_header
      _
    $region3: #{cross_attention.1} parent=1 // loop_header
      %s17 = sphi 0, %s21
      %p18 = scmp.ge.s32.totalorder %s17, 4
      %s24 = sphi 0, %s36
      %s25 = sphi 0, %s32
      %s26 = sphi 0, %s24
      %s27 = sphi 0, %s25
      %s28 = sphi 0, %s26
      %s29 = sphi 0, %s27
      %s41 = sphi 0, %s43
      %s44 = sphi 0, %s41
      %s45 = sphi 0, %s44
      %s61 = sphi 0, %s45
      %s67 = sphi 0, %s69
      %s70 = sphi 0, %s67
      %s71 = sphi 0, %s70
      %s87 = sphi 0, %s71
      %s91 = sphi 0, %s91
      %s93 = sphi 0, %s91
      %s94 = sphi 0, %s93
      %s108 = sphi 0, %s94
      %s112 = sphi 0, %s112
      %s114 = sphi 0, %s112
      %s115 = sphi 0, %s114
      %s129 = sphi 0, %s115
      %s133 = sphi 0, %s133
      %s135 = sphi 0, %s133
      %s136 = sphi 0, %s135
      %s150 = sphi 0, %s136
      %s154 = sphi 0, %s154
      %s156 = sphi 0, %s154
      %s157 = sphi 0, %s156
      %s171 = sphi 0, %s157
      %s175 = sphi 0, %s175
      %s177 = sphi 0, %s175
      %s178 = sphi 0, %s177
      %s192 = sphi 0, %s178
      %s196 = sphi 0, %s196
      %s198 = sphi 0, %s196
      %s199 = sphi 0, %s198
      %s213 = sphi 0, %s199
      %s221 = sphi 0, %s223
      %s224 = sphi 0, %s221
      %s225 = sphi 0, %s224
      %s241 = sphi 0, %s225
    $region4: #{cross_attention.1} parent=1 // loop_header_branch
      %20 = sbr.rel (%p18) target = $region8
    $region5: #{cross_attention.1} parent=1 // loop_body
      %s22 = ssub.s32 %s17, 1
      %s23 = ssub.s32 %s17, 2
      %s30 = sadd.s32 1, %s25
      %p31 = scmp.ge.s32.totalorder %s30, 1
      %s32 = scalar_select %p31, 0, %s30
      %s33 = sadd.s32 1, %s24
      %s34 = scalar_select %p31, %s33, %s24
      %p35 = scmp.ge.s32.totalorder %s34, 2
      %s36 = scalar_select %p35, 0, %s34
      %s37 = ssub.s32 %s24, %s36
      %s38 = ssub.s32 %s25, %s32
      %s39 = sor.u32 %s37, %s38
      %p40 = scmp.eq.s32.totalorder %s39, 0
      %s42 = sadd.s32 %s41, 1
      %s43 = scalar_select %p40, %s41, %s42
      %p46 = pneg %p40
      %p47 = scmp.eq.s32.totalorder %s17, 1
      %p48 = por %p46, %p47
      %p49 = scmp.ne.s32.totalorder %s41, %s44
      %p50 = scmp.eq.s32.totalorder %s17, 0
      %p51 = por %p49, %p50
      %p52 = scmp.ne.s32.totalorder %s41, %s44
      %p53 = scmp.eq.s32.totalorder %s22, 1
      %p54 = por %p52, %p53
      %p55 = scmp.ne.s32.totalorder %s44, %s45
      %p56 = scmp.eq.s32.totalorder %s22, 0
      %p57 = por %p55, %p56
      %p58 = scmp.ne.s32.totalorder %s44, %s45
      %p59 = scmp.eq.s32.totalorder %s23, 1
      %p60 = por %p58, %p59
      %p62 = scmp.ne.s32.totalorder %s45, %s61
      %p63 = scmp.eq.s32.totalorder %s23, 0
      %p64 = por %p62, %p63
      %s65 = ssub.s32 %s24, %s36
      %p66 = scmp.eq.s32.totalorder %s65, 0
      %s68 = sadd.s32 %s67, 1
      %s69 = scalar_select %p66, %s67, %s68
      %p72 = pneg %p66
      %p73 = scmp.eq.s32.totalorder %s17, 1
      %p74 = por %p72, %p73
      %p75 = scmp.ne.s32.totalorder %s67, %s70
      %p76 = scmp.eq.s32.totalorder %s17, 0
      %p77 = por %p75, %p76
      %p78 = scmp.ne.s32.totalorder %s67, %s70
      %p79 = scmp.eq.s32.totalorder %s22, 1
      %p80 = por %p78, %p79
      %p81 = scmp.ne.s32.totalorder %s70, %s71
      %p82 = scmp.eq.s32.totalorder %s22, 0
      %p83 = por %p81, %p82
      %p84 = scmp.ne.s32.totalorder %s70, %s71
      %p85 = scmp.eq.s32.totalorder %s23, 1
      %p86 = por %p84, %p85
      %p88 = scmp.ne.s32.totalorder %s71, %s87
      %p89 = scmp.eq.s32.totalorder %s23, 0
      %p90 = por %p88, %p89
      %s92 = sadd.s32 %s91, 1
      %p95 = scmp.eq.s32.totalorder %s17, 1
      %p96 = scmp.ne.s32.totalorder %s91, %s93
      %p97 = scmp.eq.s32.totalorder %s17, 0
      %p98 = por %p96, %p97
      %p99 = scmp.ne.s32.totalorder %s91, %s93
      %p100 = scmp.eq.s32.totalorder %s22, 1
      %p101 = por %p99, %p100
      %p102 = scmp.ne.s32.totalorder %s93, %s94
      %p103 = scmp.eq.s32.totalorder %s22, 0
      %p104 = por %p102, %p103
      %p105 = scmp.ne.s32.totalorder %s93, %s94
      %p106 = scmp.eq.s32.totalorder %s23, 1
      %p107 = por %p105, %p106
      %p109 = scmp.ne.s32.totalorder %s94, %s108
      %p110 = scmp.eq.s32.totalorder %s23, 0
      %p111 = por %p109, %p110
      %s113 = sadd.s32 %s112, 1
      %p116 = scmp.eq.s32.totalorder %s17, 1
      %p117 = scmp.ne.s32.totalorder %s112, %s114
      %p118 = scmp.eq.s32.totalorder %s17, 0
      %p119 = por %p117, %p118
      %p120 = scmp.ne.s32.totalorder %s112, %s114
      %p121 = scmp.eq.s32.totalorder %s22, 1
      %p122 = por %p120, %p121
      %p123 = scmp.ne.s32.totalorder %s114, %s115
      %p124 = scmp.eq.s32.totalorder %s22, 0
      %p125 = por %p123, %p124
      %p126 = scmp.ne.s32.totalorder %s114, %s115
      %p127 = scmp.eq.s32.totalorder %s23, 1
      %p128 = por %p126, %p127
      %p130 = scmp.ne.s32.totalorder %s115, %s129
      %p131 = scmp.eq.s32.totalorder %s23, 0
      %p132 = por %p130, %p131
      %s134 = sadd.s32 %s133, 1
      %p137 = scmp.eq.s32.totalorder %s17, 1
      %p138 = scmp.ne.s32.totalorder %s133, %s135
      %p139 = scmp.eq.s32.totalorder %s17, 0
      %p140 = por %p138, %p139
      %p141 = scmp.ne.s32.totalorder %s133, %s135
      %p142 = scmp.eq.s32.totalorder %s22, 1
      %p143 = por %p141, %p142
      %p144 = scmp.ne.s32.totalorder %s135, %s136
      %p145 = scmp.eq.s32.totalorder %s22, 0
      %p146 = por %p144, %p145
      %p147 = scmp.ne.s32.totalorder %s135, %s136
      %p148 = scmp.eq.s32.totalorder %s23, 1
      %p149 = por %p147, %p148
      %p151 = scmp.ne.s32.totalorder %s136, %s150
      %p152 = scmp.eq.s32.totalorder %s23, 0
      %p153 = por %p151, %p152
      %s155 = sadd.s32 %s154, 1
      %p158 = scmp.eq.s32.totalorder %s17, 1
      %p159 = scmp.ne.s32.totalorder %s154, %s156
      %p160 = scmp.eq.s32.totalorder %s17, 0
      %p161 = por %p159, %p160
      %p162 = scmp.ne.s32.totalorder %s154, %s156
      %p163 = scmp.eq.s32.totalorder %s22, 1
      %p164 = por %p162, %p163
      %p165 = scmp.ne.s32.totalorder %s156, %s157
      %p166 = scmp.eq.s32.totalorder %s22, 0
      %p167 = por %p165, %p166
      %p168 = scmp.ne.s32.totalorder %s156, %s157
      %p169 = scmp.eq.s32.totalorder %s23, 1
      %p170 = por %p168, %p169
      %p172 = scmp.ne.s32.totalorder %s157, %s171
      %p173 = scmp.eq.s32.totalorder %s23, 0
      %p174 = por %p172, %p173
      %s176 = sadd.s32 %s175, 1
      %p179 = scmp.eq.s32.totalorder %s17, 1
      %p180 = scmp.ne.s32.totalorder %s175, %s177
      %p181 = scmp.eq.s32.totalorder %s17, 0
      %p182 = por %p180, %p181
      %p183 = scmp.ne.s32.totalorder %s175, %s177
      %p184 = scmp.eq.s32.totalorder %s22, 1
      %p185 = por %p183, %p184
      %p186 = scmp.ne.s32.totalorder %s177, %s178
      %p187 = scmp.eq.s32.totalorder %s22, 0
      %p188 = por %p186, %p187
      %p189 = scmp.ne.s32.totalorder %s177, %s178
      %p190 = scmp.eq.s32.totalorder %s23, 1
      %p191 = por %p189, %p190
      %p193 = scmp.ne.s32.totalorder %s178, %s192
      %p194 = scmp.eq.s32.totalorder %s23, 0
      %p195 = por %p193, %p194
      %s197 = sadd.s32 %s196, 1
      %p200 = scmp.eq.s32.totalorder %s17, 1
      %p201 = scmp.ne.s32.totalorder %s196, %s198
      %p202 = scmp.eq.s32.totalorder %s17, 0
      %p203 = por %p201, %p202
      %p204 = scmp.ne.s32.totalorder %s196, %s198
      %p205 = scmp.eq.s32.totalorder %s22, 1
      %p206 = por %p204, %p205
      %p207 = scmp.ne.s32.totalorder %s198, %s199
      %p208 = scmp.eq.s32.totalorder %s22, 0
      %p209 = por %p207, %p208
      %p210 = scmp.ne.s32.totalorder %s198, %s199
      %p211 = scmp.eq.s32.totalorder %s23, 1
      %p212 = por %p210, %p211
      %p214 = scmp.ne.s32.totalorder %s199, %s213
      %p215 = scmp.eq.s32.totalorder %s23, 0
      %p216 = por %p214, %p215
      %s217 = ssub.s32 %s24, %s36
      %s218 = ssub.s32 %s25, %s32
      %s219 = sor.u32 %s217, %s218
      %p220 = scmp.eq.s32.totalorder %s219, 0
      %s222 = sadd.s32 %s221, 1
      %s223 = scalar_select %p220, %s221, %s222
      %p226 = pneg %p220
      %p227 = scmp.eq.s32.totalorder %s17, 1
      %p228 = por %p226, %p227
      %p229 = scmp.ne.s32.totalorder %s221, %s224
      %p230 = scmp.eq.s32.totalorder %s17, 0
      %p231 = por %p229, %p230
      %p232 = scmp.ne.s32.totalorder %s221, %s224
      %p233 = scmp.eq.s32.totalorder %s22, 1
      %p234 = por %p232, %p233
      %p235 = scmp.ne.s32.totalorder %s224, %s225
      %p236 = scmp.eq.s32.totalorder %s22, 0
      %p237 = por %p235, %p236
      %p238 = scmp.ne.s32.totalorder %s224, %s225
      %p239 = scmp.eq.s32.totalorder %s23, 1
      %p240 = por %p238, %p239
      %p242 = scmp.ne.s32.totalorder %s225, %s241
      %p243 = scmp.eq.s32.totalorder %s23, 0
      %p244 = por %p242, %p243
      %p245 = scmp.le.s32.totalorder 1, %s17
      %p246 = scmp.lt.s32.totalorder %s17, 3
      %p247 = pnand %p245, %p246
      %p248 = pneg %p247
      // Predicated region
      $region9: #{cross_attention.1} parent=5 // pred_check
        _
      $region10: #{cross_attention.1} parent=5 // pred_check_branch
        %250 = sbr.rel (%p247) target = $region12
      $region11: #{cross_attention.1} parent=5 // pred_region
        %s251 = ssub.s32 %s17, 1
        // Predicated region
        $region13: #{cross_attention.1} parent=11 // pred_check
          %p252 = pneg %p104
        $region14: #{cross_attention.1} parent=11 // pred_check_branch
          %254 = sbr.rel (%p252) target = $region16
        $region15: #{cross_attention.1} parent=11 // pred_region
          _
        $region16: #{cross_attention.1} parent=11 // pred_fallthru
          _
        // Predicated region
        $region17: #{cross_attention.1} parent=11 // pred_check
          %p255 = pneg %p125
        $region18: #{cross_attention.1} parent=11 // pred_check_branch
          %257 = sbr.rel (%p255) target = $region20
        $region19: #{cross_attention.1} parent=11 // pred_region
          _
        $region20: #{cross_attention.1} parent=11 // pred_fallthru
          _
        // Predicated region
        $region21: #{cross_attention.1} parent=11 // pred_check
          %p258 = pneg %p146
        $region22: #{cross_attention.1} parent=11 // pred_check_branch
          %260 = sbr.rel (%p258) target = $region24
        $region23: #{cross_attention.1} parent=11 // pred_region
          _
        $region24: #{cross_attention.1} parent=11 // pred_fallthru
          _
        // Predicated region
        $region25: #{cross_attention.1} parent=11 // pred_check
          %p261 = pneg %p167
        $region26: #{cross_attention.1} parent=11 // pred_check_branch
          %263 = sbr.rel (%p261) target = $region28
        $region27: #{cross_attention.1} parent=11 // pred_region
          _
        $region28: #{cross_attention.1} parent=11 // pred_fallthru
          _
        // Predicated region
        $region29: #{cross_attention.1} parent=11 // pred_check
          %p264 = pneg %p188
        $region30: #{cross_attention.1} parent=11 // pred_check_branch
          %266 = sbr.rel (%p264) target = $region32
        $region31: #{cross_attention.1} parent=11 // pred_region
          _
        $region32: #{cross_attention.1} parent=11 // pred_fallthru
          _
        // Predicated region
        $region33: #{cross_attention.1} parent=11 // pred_check
          %p267 = pneg %p209
        $region34: #{cross_attention.1} parent=11 // pred_check_branch
          %269 = sbr.rel (%p267) target = $region36
        $region35: #{cross_attention.1} parent=11 // pred_region
          _
        $region36: #{cross_attention.1} parent=11 // pred_fallthru
          _
      $region12: #{cross_attention.1} parent=5 // pred_fallthru
        _
      %p270 = scmp.lt.s32.totalorder %s17, 2
      // Predicated region
      $region37: #{cross_attention.1} parent=5 // pred_check
        %p271 = pneg %p270
      $region38: #{cross_attention.1} parent=5 // pred_check_branch
        %273 = sbr.rel (%p271) target = $region40
      $region39: #{cross_attention.1} parent=5 // pred_region
        // Predicated region
        $region41: #{cross_attention.1} parent=39 // pred_check
          %p274 = pneg %p51
        $region42: #{cross_attention.1} parent=39 // pred_check_branch
          %276 = sbr.rel (%p274) target = $region44
        $region43: #{cross_attention.1} parent=39 // pred_region
          %s277 = smul.u32 2, %s25
          %p278 = scmp.lt.s32.totalorder %s24, 1
          %s279 = scalar_select %p278, %s24, 1
          %p280 = scmp.lt.s32.totalorder %s277, 1
          %s281 = scalar_select %p280, %s277, 1
          %s282 = smul.addr %s279, 2
          %s283 = sadd.s32 %s281, %s282
          %s284 = smul.addr %s283, 8
          %s285 = scalar_lea.vmem %s0, %s284
          %s286 = smul.u32 2, %s25
        $region44: #{cross_attention.1} parent=39 // pred_fallthru
          _
        // Predicated region
        $region45: #{cross_attention.1} parent=39 // pred_check
          %p287 = pneg %p77
        $region46: #{cross_attention.1} parent=39 // pred_check_branch
          %289 = sbr.rel (%p287) target = $region48
        $region47: #{cross_attention.1} parent=39 // pred_region
          %p290 = scmp.lt.s32.totalorder %s24, 1
          %s291 = scalar_select %p290, %s24, 1
          %s292 = smul.addr %s291, 8
          %s293 = scalar_lea.vmem %s1, %s292
        $region48: #{cross_attention.1} parent=39 // pred_fallthru
          _
      $region40: #{cross_attention.1} parent=5 // pred_fallthru
        _
      %p294 = scmp.le.s32.totalorder 1, %s17
      %p295 = scmp.lt.s32.totalorder %s17, 3
      %p296 = pnand %p294, %p295
      %p297 = pneg %p296
      // Predicated region
      $region49: #{cross_attention.1} parent=5 // pred_check
        _
      $region50: #{cross_attention.1} parent=5 // pred_check_branch
        %299 = sbr.rel (%p296) target = $region52
      $region51: #{cross_attention.1} parent=5 // pred_region
        %s300 = ssub.s32 %s17, 1
        %s301 = smul.u32 2, %s27
        %p302 = scmp.lt.s32.totalorder %s26, 1
        %s303 = scalar_select %p302, %s26, 1
        %p304 = scmp.lt.s32.totalorder %s301, 1
        %s305 = scalar_select %p304, %s301, 1
        %s306 = smul.addr %s303, 2
        %s307 = sadd.s32 %s305, %s306
        %s308 = smul.addr %s307, 8
        %s309 = scalar_lea.vmem %s0, %s308
        %p310 = pneg %p57
        %p311 = pneg %p54
        %p312 = scmp.lt.s32.totalorder %s26, 1
        %s313 = scalar_select %p312, %s26, 1
        %s314 = smul.addr %s313, 8
        %s315 = scalar_lea.vmem %s1, %s314
        %p316 = pneg %p83
        %p317 = pneg %p80
        %p318 = pneg %p104
        %p319 = pneg %p101
        %p320 = pneg %p125
        %p321 = pneg %p122
        %p322 = pneg %p146
        %p323 = pneg %p143
        %p324 = pneg %p167
        %p325 = pneg %p164
        %p326 = pneg %p188
        %p327 = pneg %p185
        %p328 = pneg %p209
        %p329 = pneg %p206
        %p330 = pneg %p237
        %p331 = pneg %p234
        %s332 = sand.u32 %s224, 1
        %s333 = scalar_lea.sflag [#allocation6], %s332
        %s334 = sand.u32 %s224, 1
        %s335 = smul.addr %s334, 16
        %s336 = scalar_lea.vmem [#allocation5], %s335
        %s337 = smul.u32 2, %s27
        %p338 = scmp.lt.s32.totalorder %s26, 1
        %s339 = scalar_select %p338, %s26, 1
        %p340 = scmp.lt.s32.totalorder %s337, 1
        %s341 = scalar_select %p340, %s337, 1
        %s342 = smul.addr %s339, 2
        %s343 = sadd.s32 %s341, %s342
        %s344 = smul.addr %s343, 8
        %s345 = scalar_lea.vmem %s0, %s344
        %s346 = smul.u32 2, %s27
        %p347 = scmp.lt.s32.totalorder %s26, 1
        %s348 = scalar_select %p347, %s26, 1
        %s349 = smul.addr %s348, 8
        %s350 = scalar_lea.vmem %s1, %s349
        %s351 = smul.u32 2, %s27
        %p352 = scmp.eq.s32.totalorder %s27, 0
        // Predicated region
        $region53: #{cross_attention.1} parent=51 // pred_check
          %p353 = pneg %p352
        $region54: #{cross_attention.1} parent=51 // pred_check_branch
          %355 = sbr.rel (%p353) target = $region56
        $region55: #{cross_attention.1} parent=51 // pred_region
          %v356 = vld [vmem:[%s350] sm:$0xff]
          %v357 = vld [vmem:[%s4] sm:$0xff]
          %v358 = vld [vmem:[%s4 + $0x8] sm:$0xff]
          %v359 = vld [vmem:[%s4 + $0x10] sm:$0xff]
          %v360 = vld [vmem:[%s5] sm:$0x1]
          %v362 = vperm.slane %v360, 0
          %vm364 = vcmask 195584
          %v366 = vsel %vm364, %v356, 0
          %368 = vmatpush.msra.mxu0 0.0
          %369 = vmatpush.msra.mxu0 0.0
          %370 = vmatpush.msra.mxu0 0.0
          %371 = vmatpush.msra.mxu0 0.0
          %372 = vmatpush.msra.mxu0 0.0
          %373 = vmatpush.msra.mxu0 0.0
          %374 = vmatpush.msra.mxu0 0.0
          %375 = vmatpush.msra.mxu0 0.0
          %376 = vmatpush.msra.mxu0 0.0
          %377 = vmatpush.msra.mxu0 0.0
          %378 = vmatpush.msra.mxu0 0.0
          %379 = vmatpush.msra.mxu0 0.0
          %380 = vmatpush.msra.mxu0 0.0
          %381 = vmatpush.msra.mxu0 %v359
          %382 = vmatpush.msra.mxu0 %v358
          %383 = vmatpush.msra.mxu0 %v357
          %384 = vmatmul.f32.gmra.mxu0 %v366
          %v385 = vpop.f32.mrf.mxu0
          %v386 = vadd.f32 %v362, %v385
          %387 = vdwg.mxu0
          %vm388 = vcmask 261120
          %389 = vst.msk [vmem:[#allocation2] sm:$0xff] %vm388, %v386
          %391 = vrot.lane.b32.xlu0 %v386, 96
          %v392 = vpop.permute.xlu0 %391
          %394 = vst.msk [vmem:[#allocation3] sm:$0xff] %vm388, %v392
        $region56: #{cross_attention.1} parent=51 // pred_fallthru
          _
        %v395 = vld [vmem:[%s345] sm:$0xff]
        %v396 = vld [vmem:[%s345 + $0x8] sm:$0xff]
        %v397 = vld [vmem:[%s2] sm:$0xff]
        %v398 = vld [vmem:[%s2 + $0x8] sm:$0xff]
        %v399 = vld [vmem:[%s2 + $0x10] sm:$0xff]
        %v400 = vld [vmem:[%s2 + $0x18] sm:$0xff]
        %v401 = vld [vmem:[%s3] sm:$0x1]
        %v403 = vperm.slane %v401, 0
        %vm405 = vcmask 261120
        %v407 = vsel %vm405, %v395, 0
        %v410 = vsel %vm405, %v396, 0
        %412 = vmatpush.msra.mxu0 0.0
        %413 = vmatpush.msra.mxu0 0.0
        %414 = vmatpush.msra.mxu0 0.0
        %415 = vmatpush.msra.mxu0 0.0
        %416 = vmatpush.msra.mxu0 0.0
        %417 = vmatpush.msra.mxu0 0.0
        %418 = vmatpush.msra.mxu0 0.0
        %419 = vmatpush.msra.mxu0 0.0
        %420 = vmatpush.msra.mxu0 0.0
        %421 = vmatpush.msra.mxu0 0.0
        %422 = vmatpush.msra.mxu0 0.0
        %423 = vmatpush.msra.mxu0 0.0
        %424 = vmatpush.msra.mxu0 %v400
        %425 = vmatpush.msra.mxu0 %v399
        %426 = vmatpush.msra.mxu0 %v398
        %427 = vmatpush.msra.mxu0 %v397
        %428 = vmatmul.f32.gmra.mxu0 %v407
        %v429 = vpop.f32.mrf.mxu0
        %v430 = vadd.f32 %v403, %v429
        %431 = vmatmul.f32.gmra.mxu0 %v410
        %v432 = vpop.f32.mrf.mxu0
        %v433 = vadd.f32 %v403, %v432
        %434 = vdwg.mxu0
        %v435 = vld [vmem:[#allocation2] sm:$0xff]
        %v436 = vld [vmem:[#allocation3] sm:$0xff]
        %vm437 = vcmask 64512
        %v439 = vsel %vm437, %v430, 0
        %v442 = vsel %vm437, %v433, 0
        %v445 = vsel %vm437, %v435, 0
        %447 = vmatpush.xpose.msra.mxu0 0.0
        %448 = vmatpush.xpose.msra.mxu0 0.0
        %449 = vmatpush.xpose.msra.mxu0 0.0
        %450 = vmatpush.xpose.msra.mxu0 0.0
        %451 = vmatpush.xpose.msra.mxu0 0.0
        %452 = vmatpush.xpose.msra.mxu0 0.0
        %453 = vmatpush.xpose.msra.mxu0 0.0
        %454 = vmatpush.xpose.msra.mxu0 0.0
        %455 = vmatpush.xpose.msra.mxu0 0.0
        %456 = vmatpush.xpose.msra.mxu0 0.0
        %457 = vmatpush.xpose.msra.mxu0 0.0
        %458 = vmatpush.xpose.msra.mxu0 0.0
        %459 = vmatpush.xpose.msra.mxu0 0.0
        %460 = vmatpush.xpose.msra.mxu0 0.0
        %461 = vmatpush.xpose.msra.mxu0 0.0
        %462 = vmatpush.xpose.msra.mxu0 %v445
        %463 = vmatmul.f32.gmra.mxu0 %v439
        %v464 = vpop.f32.mrf.mxu0
        %v465 = vadd.f32 0.0, %v464
        %466 = vmatmul.f32.gmra.mxu0 %v442
        %v467 = vpop.f32.mrf.mxu0
        %v468 = vadd.f32 0.0, %v467
        %469 = vdwg.mxu0
        %v470 = vsel %vm437, %v465, -inf
        %471 = vmax.xlane.f32.xlu0 %v470
        %v472 = vpop.xlane.xlu0 %471
        %v473 = vsel %vm437, %v468, -inf
        %474 = vmax.xlane.f32.xlu0 %v473
        %v475 = vpop.xlane.xlu0 %474
        %v476 = vsub.f32 %v465, %v472
        %v477 = vsub.f32 %v468, %v475
        %v478 = vmul.f32 %v476, 1.442695
        %v479 = vpow.pop %v478
        %v480 = vmul.f32 %v477, 1.442695
        %v481 = vpow.pop %v480
        %v482 = vsel %vm437, %v479, 0.0
        %483 = vadd.xlane.f32.xlu0 %v482
        %v484 = vpop.xlane.xlu0 %483
        %v485 = vsel %vm437, %v481, 0.0
        %486 = vadd.xlane.f32.xlu0 %v485
        %v487 = vpop.xlane.xlu0 %486
        %v488 = vrcp.pop %v484
        %v489 = vmul.f32 %v484, %v488
        %v490 = vsub.f32 1.0, %v489
        %v491 = vmul.f32 %v488, %v490
        %v492 = vadd.f32 %v488, %v491
        %vm493 = vweird.f32 %v484
        %vm494 = vweird.f32 %v488
        %vm495 = vmor %vm493, %vm494
        %v496 = vsel %vm495, %v488, %v492
        %v497 = vand.u32 2147483647, %v484
        %vm498 = vcmp.eq.f32.partialorder %v497, 8.507059e+37
        %v499 = vand.u32 %v484, 2147483648
        %v500 = vor.u32 1.1754944e-38, %v499
        %v501 = vsel %vm498, %v500, %v496
        %v502 = vrcp.pop %v487
        %v503 = vmul.f32 %v487, %v502
        %v504 = vsub.f32 1.0, %v503
        %v505 = vmul.f32 %v502, %v504
        %v506 = vadd.f32 %v502, %v505
        %vm507 = vweird.f32 %v487
        %vm508 = vweird.f32 %v502
        %vm509 = vmor %vm507, %vm508
        %v510 = vsel %vm509, %v502, %v506
        %v511 = vand.u32 2147483647, %v487
        %vm512 = vcmp.eq.f32.partialorder %v511, 8.507059e+37
        %v513 = vand.u32 %v487, 2147483648
        %v514 = vor.u32 1.1754944e-38, %v513
        %v515 = vsel %vm512, %v514, %v510
        %v516 = vmul.f32 %v479, %v501
        %v517 = vmul.f32 %v481, %v515
        %v519 = vsel %vm437, %v516, 0
        %v522 = vsel %vm437, %v517, 0
        %524 = vmatpush.msra.mxu0 0.0
        %525 = vmatpush.msra.mxu0 0.0
        %526 = vmatpush.msra.mxu0 0.0
        %527 = vmatpush.msra.mxu0 0.0
        %528 = vmatpush.msra.mxu0 0.0
        %529 = vmatpush.msra.mxu0 0.0
        %530 = vmatpush.msra.mxu0 0.0
        %531 = vmatpush.msra.mxu0 0.0
        %532 = vmatpush.msra.mxu0 0.0
        %533 = vmatpush.msra.mxu0 0.0
        %534 = vmatpush.msra.mxu0 0.0
        %535 = vmatpush.msra.mxu0 0.0
        %536 = vmatpush.msra.mxu0 0.0
        %537 = vmatpush.msra.mxu0 0.0
        %538 = vmatpush.msra.mxu0 0.0
        %539 = vmatpush.msra.mxu0 %v436
        %540 = vmatmul.f32.gmra.mxu0 %v519
        %v541 = vpop.f32.mrf.mxu0
        %v542 = vadd.f32 0.0, %v541
        %543 = vmatmul.f32.gmra.mxu0 %v522
        %v544 = vpop.f32.mrf.mxu0
        %v545 = vadd.f32 0.0, %v544
        %546 = vdwg.mxu0
        %547 = vst.msk [vmem:[#allocation4] sm:$0xff] %vm437, %v542
        %548 = vst.msk [vmem:[#allocation4 + $0x8] sm:$0xff] %vm437, %v545
        %549 = vrot.lane.b32.xlu0 %v430, 120
        %v550 = vpop.permute.xlu0 %549
        %551 = vrot.lane.b32.xlu0 %v433, 120
        %v552 = vpop.permute.xlu0 %551
        %553 = vrot.lane.b32.xlu0 %v435, 120
        %v554 = vpop.permute.xlu0 %553
        %v555 = vsel %vm437, %v550, 0
        %v557 = vsel %vm437, %v552, 0
        %v559 = vsel %vm437, %v554, 0
        %561 = vmatpush.xpose.msra.mxu0 0.0
        %562 = vmatpush.xpose.msra.mxu0 0.0
        %563 = vmatpush.xpose.msra.mxu0 0.0
        %564 = vmatpush.xpose.msra.mxu0 0.0
        %565 = vmatpush.xpose.msra.mxu0 0.0
        %566 = vmatpush.xpose.msra.mxu0 0.0
        %567 = vmatpush.xpose.msra.mxu0 0.0
        %568 = vmatpush.xpose.msra.mxu0 0.0
        %569 = vmatpush.xpose.msra.mxu0 0.0
        %570 = vmatpush.xpose.msra.mxu0 0.0
        %571 = vmatpush.xpose.msra.mxu0 0.0
        %572 = vmatpush.xpose.msra.mxu0 0.0
        %573 = vmatpush.xpose.msra.mxu0 0.0
        %574 = vmatpush.xpose.msra.mxu0 0.0
        %575 = vmatpush.xpose.msra.mxu0 0.0
        %576 = vmatpush.xpose.msra.mxu0 %v559
        %577 = vmatmul.f32.gmra.mxu0 %v555
        %v578 = vpop.f32.mrf.mxu0
        %v579 = vadd.f32 0.0, %v578
        %580 = vmatmul.f32.gmra.mxu0 %v557
        %v581 = vpop.f32.mrf.mxu0
        %v582 = vadd.f32 0.0, %v581
        %583 = vdwg.mxu0
        %v584 = vsel %vm437, %v579, -inf
        %585 = vmax.xlane.f32.xlu0 %v584
        %v586 = vpop.xlane.xlu0 %585
        %v587 = vsel %vm437, %v582, -inf
        %588 = vmax.xlane.f32.xlu0 %v587
        %v589 = vpop.xlane.xlu0 %588
        %v590 = vsub.f32 %v579, %v586
        %v591 = vsub.f32 %v582, %v589
        %v592 = vmul.f32 %v590, 1.442695
        %v593 = vpow.pop %v592
        %v594 = vmul.f32 %v591, 1.442695
        %v595 = vpow.pop %v594
        %v596 = vsel %vm437, %v593, 0.0
        %597 = vadd.xlane.f32.xlu0 %v596
        %v598 = vpop.xlane.xlu0 %597
        %v599 = vsel %vm437, %v595, 0.0
        %600 = vadd.xlane.f32.xlu0 %v599
        %v601 = vpop.xlane.xlu0 %600
        %v602 = vrcp.pop %v598
        %v603 = vmul.f32 %v598, %v602
        %v604 = vsub.f32 1.0, %v603
        %v605 = vmul.f32 %v602, %v604
        %v606 = vadd.f32 %v602, %v605
        %vm607 = vweird.f32 %v598
        %vm608 = vweird.f32 %v602
        %vm609 = vmor %vm607, %vm608
        %v610 = vsel %vm609, %v602, %v606
        %v611 = vand.u32 2147483647, %v598
        %vm612 = vcmp.eq.f32.partialorder %v611, 8.507059e+37
        %v613 = vand.u32 %v598, 2147483648
        %v614 = vor.u32 1.1754944e-38, %v613
        %v615 = vsel %vm612, %v614, %v610
        %v616 = vrcp.pop %v601
        %v617 = vmul.f32 %v601, %v616
        %v618 = vsub.f32 1.0, %v617
        %v619 = vmul.f32 %v616, %v618
        %v620 = vadd.f32 %v616, %v619
        %vm621 = vweird.f32 %v601
        %vm622 = vweird.f32 %v616
        %vm623 = vmor %vm621, %vm622
        %v624 = vsel %vm623, %v616, %v620
        %v625 = vand.u32 2147483647, %v601
        %vm626 = vcmp.eq.f32.partialorder %v625, 8.507059e+37
        %v627 = vand.u32 %v601, 2147483648
        %v628 = vor.u32 1.1754944e-38, %v627
        %v629 = vsel %vm626, %v628, %v624
        %v630 = vmul.f32 %v593, %v615
        %v631 = vmul.f32 %v595, %v629
        %633 = vrot.lane.b32.xlu0 %v436, 120
        %v634 = vpop.permute.xlu0 %633
        %v637 = vsel %vm437, %v630, 0
        %v640 = vsel %vm437, %v631, 0
        %642 = vmatpush.msra.mxu0 0.0
        %643 = vmatpush.msra.mxu0 0.0
        %644 = vmatpush.msra.mxu0 0.0
        %645 = vmatpush.msra.mxu0 0.0
        %646 = vmatpush.msra.mxu0 0.0
        %647 = vmatpush.msra.mxu0 0.0
        %648 = vmatpush.msra.mxu0 0.0
        %649 = vmatpush.msra.mxu0 0.0
        %650 = vmatpush.msra.mxu0 0.0
        %651 = vmatpush.msra.mxu0 0.0
        %652 = vmatpush.msra.mxu0 0.0
        %653 = vmatpush.msra.mxu0 0.0
        %654 = vmatpush.msra.mxu0 0.0
        %655 = vmatpush.msra.mxu0 0.0
        %656 = vmatpush.msra.mxu0 0.0
        %657 = vmatpush.msra.mxu0 %v634
        %658 = vmatmul.f32.gmra.mxu0 %v637
        %v659 = vpop.f32.mrf.mxu0
        %v660 = vadd.f32 0.0, %v659
        %661 = vmatmul.f32.gmra.mxu0 %v640
        %v662 = vpop.f32.mrf.mxu0
        %v663 = vadd.f32 0.0, %v662
        %664 = vdwg.mxu0
        %667 = vrot.lane.b32.xlu0 %v660, 8
        %v668 = vpop.permute.xlu0 %667
        %669 = vrot.lane.b32.xlu0 %v663, 8
        %v670 = vpop.permute.xlu0 %669
        %vm673 = vcmask 130112
        %674 = vst.msk [vmem:[#allocation4] sm:$0xff] %vm673, %v668
        %675 = vst.msk [vmem:[#allocation4 + $0x8] sm:$0xff] %vm673, %v670
        %676 = vrot.lane.b32.xlu0 %v430, 112
        %v677 = vpop.permute.xlu0 %676
        %678 = vrot.lane.b32.xlu0 %v433, 112
        %v679 = vpop.permute.xlu0 %678
        %680 = vrot.lane.b32.xlu0 %v435, 112
        %v681 = vpop.permute.xlu0 %680
        %v682 = vsel %vm437, %v677, 0
        %v684 = vsel %vm437, %v679, 0
        %v686 = vsel %vm437, %v681, 0
        %688 = vmatpush.xpose.msra.mxu0 0.0
        %689 = vmatpush.xpose.msra.mxu0 0.0
        %690 = vmatpush.xpose.msra.mxu0 0.0
        %691 = vmatpush.xpose.msra.mxu0 0.0
        %692 = vmatpush.xpose.msra.mxu0 0.0
        %693 = vmatpush.xpose.msra.mxu0 0.0
        %694 = vmatpush.xpose.msra.mxu0 0.0
        %695 = vmatpush.xpose.msra.mxu0 0.0
        %696 = vmatpush.xpose.msra.mxu0 0.0
        %697 = vmatpush.xpose.msra.mxu0 0.0
        %698 = vmatpush.xpose.msra.mxu0 0.0
        %699 = vmatpush.xpose.msra.mxu0 0.0
        %700 = vmatpush.xpose.msra.mxu0 0.0
        %701 = vmatpush.xpose.msra.mxu0 0.0
        %702 = vmatpush.xpose.msra.mxu0 0.0
        %703 = vmatpush.xpose.msra.mxu0 %v686
        %704 = vmatmul.f32.gmra.mxu0 %v682
        %v705 = vpop.f32.mrf.mxu0
        %v706 = vadd.f32 0.0, %v705
        %707 = vmatmul.f32.gmra.mxu0 %v684
        %v708 = vpop.f32.mrf.mxu0
        %v709 = vadd.f32 0.0, %v708
        %710 = vdwg.mxu0
        %v711 = vsel %vm437, %v706, -inf
        %712 = vmax.xlane.f32.xlu0 %v711
        %v713 = vpop.xlane.xlu0 %712
        %v714 = vsel %vm437, %v709, -inf
        %715 = vmax.xlane.f32.xlu0 %v714
        %v716 = vpop.xlane.xlu0 %715
        %v717 = vsub.f32 %v706, %v713
        %v718 = vsub.f32 %v709, %v716
        %v719 = vmul.f32 %v717, 1.442695
        %v720 = vpow.pop %v719
        %v721 = vmul.f32 %v718, 1.442695
        %v722 = vpow.pop %v721
        %v723 = vsel %vm437, %v720, 0.0
        %724 = vadd.xlane.f32.xlu0 %v723
        %v725 = vpop.xlane.xlu0 %724
        %v726 = vsel %vm437, %v722, 0.0
        %727 = vadd.xlane.f32.xlu0 %v726
        %v728 = vpop.xlane.xlu0 %727
        %v729 = vrcp.pop %v725
        %v730 = vmul.f32 %v725, %v729
        %v731 = vsub.f32 1.0, %v730
        %v732 = vmul.f32 %v729, %v731
        %v733 = vadd.f32 %v729, %v732
        %vm734 = vweird.f32 %v725
        %vm735 = vweird.f32 %v729
        %vm736 = vmor %vm734, %vm735
        %v737 = vsel %vm736, %v729, %v733
        %v738 = vand.u32 2147483647, %v725
        %vm739 = vcmp.eq.f32.partialorder %v738, 8.507059e+37
        %v740 = vand.u32 %v725, 2147483648
        %v741 = vor.u32 1.1754944e-38, %v740
        %v742 = vsel %vm739, %v741, %v737
        %v743 = vrcp.pop %v728
        %v744 = vmul.f32 %v728, %v743
        %v745 = vsub.f32 1.0, %v744
        %v746 = vmul.f32 %v743, %v745
        %v747 = vadd.f32 %v743, %v746
        %vm748 = vweird.f32 %v728
        %vm749 = vweird.f32 %v743
        %vm750 = vmor %vm748, %vm749
        %v751 = vsel %vm750, %v743, %v747
        %v752 = vand.u32 2147483647, %v728
        %vm753 = vcmp.eq.f32.partialorder %v752, 8.507059e+37
        %v754 = vand.u32 %v728, 2147483648
        %v755 = vor.u32 1.1754944e-38, %v754
        %v756 = vsel %vm753, %v755, %v751
        %v757 = vmul.f32 %v720, %v742
        %v758 = vmul.f32 %v722, %v756
        %759 = vrot.lane.b32.xlu0 %v436, 112
        %v760 = vpop.permute.xlu0 %759
        %v763 = vsel %vm437, %v757, 0
        %v766 = vsel %vm437, %v758, 0
        %768 = vmatpush.msra.mxu0 0.0
        %769 = vmatpush.msra.mxu0 0.0
        %770 = vmatpush.msra.mxu0 0.0
        %771 = vmatpush.msra.mxu0 0.0
        %772 = vmatpush.msra.mxu0 0.0
        %773 = vmatpush.msra.mxu0 0.0
        %774 = vmatpush.msra.mxu0 0.0
        %775 = vmatpush.msra.mxu0 0.0
        %776 = vmatpush.msra.mxu0 0.0
        %777 = vmatpush.msra.mxu0 0.0
        %778 = vmatpush.msra.mxu0 0.0
        %779 = vmatpush.msra.mxu0 0.0
        %780 = vmatpush.msra.mxu0 0.0
        %781 = vmatpush.msra.mxu0 0.0
        %782 = vmatpush.msra.mxu0 0.0
        %783 = vmatpush.msra.mxu0 %v760
        %784 = vmatmul.f32.gmra.mxu0 %v763
        %v785 = vpop.f32.mrf.mxu0
        %v786 = vadd.f32 0.0, %v785
        %787 = vmatmul.f32.gmra.mxu0 %v766
        %v788 = vpop.f32.mrf.mxu0
        %v789 = vadd.f32 0.0, %v788
        %790 = vdwg.mxu0
        %793 = vrot.lane.b32.xlu0 %v786, 16
        %v794 = vpop.permute.xlu0 %793
        %795 = vrot.lane.b32.xlu0 %v789, 16
        %v796 = vpop.permute.xlu0 %795
        %vm799 = vcmask 195712
        %800 = vst.msk [vmem:[#allocation4] sm:$0xff] %vm799, %v794
        %801 = vst.msk [vmem:[#allocation4 + $0x8] sm:$0xff] %vm799, %v796
        %802 = vrot.lane.b32.xlu0 %v430, 104
        %v803 = vpop.permute.xlu0 %802
        %804 = vrot.lane.b32.xlu0 %v433, 104
        %v805 = vpop.permute.xlu0 %804
        %806 = vrot.lane.b32.xlu0 %v435, 104
        %v807 = vpop.permute.xlu0 %806
        %v808 = vsel %vm437, %v803, 0
        %v810 = vsel %vm437, %v805, 0
        %v812 = vsel %vm437, %v807, 0
        %814 = vmatpush.xpose.msra.mxu0 0.0
        %815 = vmatpush.xpose.msra.mxu0 0.0
        %816 = vmatpush.xpose.msra.mxu0 0.0
        %817 = vmatpush.xpose.msra.mxu0 0.0
        %818 = vmatpush.xpose.msra.mxu0 0.0
        %819 = vmatpush.xpose.msra.mxu0 0.0
        %820 = vmatpush.xpose.msra.mxu0 0.0
        %821 = vmatpush.xpose.msra.mxu0 0.0
        %822 = vmatpush.xpose.msra.mxu0 0.0
        %823 = vmatpush.xpose.msra.mxu0 0.0
        %824 = vmatpush.xpose.msra.mxu0 0.0
        %825 = vmatpush.xpose.msra.mxu0 0.0
        %826 = vmatpush.xpose.msra.mxu0 0.0
        %827 = vmatpush.xpose.msra.mxu0 0.0
        %828 = vmatpush.xpose.msra.mxu0 0.0
        %829 = vmatpush.xpose.msra.mxu0 %v812
        %830 = vmatmul.f32.gmra.mxu0 %v808
        %v831 = vpop.f32.mrf.mxu0
        %v832 = vadd.f32 0.0, %v831
        %833 = vmatmul.f32.gmra.mxu0 %v810
        %v834 = vpop.f32.mrf.mxu0
        %v835 = vadd.f32 0.0, %v834
        %836 = vdwg.mxu0
        %v837 = vsel %vm437, %v832, -inf
        %838 = vmax.xlane.f32.xlu0 %v837
        %v839 = vpop.xlane.xlu0 %838
        %v840 = vsel %vm437, %v835, -inf
        %841 = vmax.xlane.f32.xlu0 %v840
        %v842 = vpop.xlane.xlu0 %841
        %v843 = vsub.f32 %v832, %v839
        %v844 = vsub.f32 %v835, %v842
        %v845 = vmul.f32 %v843, 1.442695
        %v846 = vpow.pop %v845
        %v847 = vmul.f32 %v844, 1.442695
        %v848 = vpow.pop %v847
        %v849 = vsel %vm437, %v846, 0.0
        %850 = vadd.xlane.f32.xlu0 %v849
        %v851 = vpop.xlane.xlu0 %850
        %v852 = vsel %vm437, %v848, 0.0
        %853 = vadd.xlane.f32.xlu0 %v852
        %v854 = vpop.xlane.xlu0 %853
        %v855 = vrcp.pop %v851
        %v856 = vmul.f32 %v851, %v855
        %v857 = vsub.f32 1.0, %v856
        %v858 = vmul.f32 %v855, %v857
        %v859 = vadd.f32 %v855, %v858
        %vm860 = vweird.f32 %v851
        %vm861 = vweird.f32 %v855
        %vm862 = vmor %vm860, %vm861
        %v863 = vsel %vm862, %v855, %v859
        %v864 = vand.u32 2147483647, %v851
        %vm865 = vcmp.eq.f32.partialorder %v864, 8.507059e+37
        %v866 = vand.u32 %v851, 2147483648
        %v867 = vor.u32 1.1754944e-38, %v866
        %v868 = vsel %vm865, %v867, %v863
        %v869 = vrcp.pop %v854
        %v870 = vmul.f32 %v854, %v869
        %v871 = vsub.f32 1.0, %v870
        %v872 = vmul.f32 %v869, %v871
        %v873 = vadd.f32 %v869, %v872
        %vm874 = vweird.f32 %v854
        %vm875 = vweird.f32 %v869
        %vm876 = vmor %vm874, %vm875
        %v877 = vsel %vm876, %v869, %v873
        %v878 = vand.u32 2147483647, %v854
        %vm879 = vcmp.eq.f32.partialorder %v878, 8.507059e+37
        %v880 = vand.u32 %v854, 2147483648
        %v881 = vor.u32 1.1754944e-38, %v880
        %v882 = vsel %vm879, %v881, %v877
        %v883 = vmul.f32 %v846, %v868
        %v884 = vmul.f32 %v848, %v882
        %885 = vrot.lane.b32.xlu0 %v436, 104
        %v886 = vpop.permute.xlu0 %885
        %v889 = vsel %vm437, %v883, 0
        %v892 = vsel %vm437, %v884, 0
        %894 = vmatpush.msra.mxu0 0.0
        %895 = vmatpush.msra.mxu0 0.0
        %896 = vmatpush.msra.mxu0 0.0
        %897 = vmatpush.msra.mxu0 0.0
        %898 = vmatpush.msra.mxu0 0.0
        %899 = vmatpush.msra.mxu0 0.0
        %900 = vmatpush.msra.mxu0 0.0
        %901 = vmatpush.msra.mxu0 0.0
        %902 = vmatpush.msra.mxu0 0.0
        %903 = vmatpush.msra.mxu0 0.0
        %904 = vmatpush.msra.mxu0 0.0
        %905 = vmatpush.msra.mxu0 0.0
        %906 = vmatpush.msra.mxu0 0.0
        %907 = vmatpush.msra.mxu0 0.0
        %908 = vmatpush.msra.mxu0 0.0
        %909 = vmatpush.msra.mxu0 %v886
        %910 = vmatmul.f32.gmra.mxu0 %v889
        %v911 = vpop.f32.mrf.mxu0
        %v912 = vadd.f32 0.0, %v911
        %913 = vmatmul.f32.gmra.mxu0 %v892
        %v914 = vpop.f32.mrf.mxu0
        %v915 = vadd.f32 0.0, %v914
        %916 = vdwg.mxu0
        %919 = vrot.lane.b32.xlu0 %v912, 24
        %v920 = vpop.permute.xlu0 %919
        %921 = vrot.lane.b32.xlu0 %v915, 24
        %v922 = vpop.permute.xlu0 %921
        %vm925 = vcmask 261312
        %926 = vst.msk [vmem:[#allocation4] sm:$0xff] %vm925, %v920
        %927 = vst.msk [vmem:[#allocation4 + $0x8] sm:$0xff] %vm925, %v922
        %v928 = vld [vmem:[#allocation4] sm:$0xff]
        %v929 = vld [vmem:[#allocation4 + $0x8] sm:$0xff]
        %v930 = vld [vmem:[%s6] sm:$0xff]
        %v931 = vld [vmem:[%s6 + $0x8] sm:$0xff]
        %v932 = vld [vmem:[%s6 + $0x10] sm:$0xff]
        %v933 = vld [vmem:[%s6 + $0x18] sm:$0xff]
        %v934 = vld [vmem:[%s7] sm:$0x1]
        %v936 = vperm.slane %v934, 0
        %v939 = vsel %vm405, %v928, 0
        %v942 = vsel %vm405, %v929, 0
        %944 = vmatpush.msra.mxu0 0.0
        %945 = vmatpush.msra.mxu0 0.0
        %946 = vmatpush.msra.mxu0 0.0
        %947 = vmatpush.msra.mxu0 0.0
        %948 = vmatpush.msra.mxu0 0.0
        %949 = vmatpush.msra.mxu0 0.0
        %950 = vmatpush.msra.mxu0 0.0
        %951 = vmatpush.msra.mxu0 0.0
        %952 = vmatpush.msra.mxu0 0.0
        %953 = vmatpush.msra.mxu0 0.0
        %954 = vmatpush.msra.mxu0 0.0
        %955 = vmatpush.msra.mxu0 0.0
        %956 = vmatpush.msra.mxu0 %v933
        %957 = vmatpush.msra.mxu0 %v932
        %958 = vmatpush.msra.mxu0 %v931
        %959 = vmatpush.msra.mxu0 %v930
        %960 = vmatmul.f32.gmra.mxu0 %v939
        %v961 = vpop.f32.mrf.mxu0
        %v962 = vadd.f32 %v936, %v961
        %963 = vmatmul.f32.gmra.mxu0 %v942
        %v964 = vpop.f32.mrf.mxu0
        %v965 = vadd.f32 %v936, %v964
        %966 = vdwg.mxu0
        %967 = vst.msk [vmem:[%s336] sm:$0xff] %vm405, %v962
        %968 = vst.msk [vmem:[%s336 + $0x8] sm:$0xff] %vm405, %v965
        %s969 = sand.u32 %s224, 1
        %s970 = scalar_lea.sflag [#allocation6], %s969
        %s971 = sand.u32 %s224, 1
        %s972 = smul.addr %s971, 16
        %s973 = scalar_lea.vmem [#allocation5], %s972
        // Predicated region
        $region57: #{cross_attention.1} parent=51 // pred_check
          %p974 = pneg %p234
        $region58: #{cross_attention.1} parent=51 // pred_check_branch
          %976 = sbr.rel (%p974) target = $region60
        $region59: #{cross_attention.1} parent=51 // pred_region
          %s977 = smul.u32 2, %s27
          %979 = vsyncadd %s970, 0
          %s980 = smul.addr %s26, 2
          %s981 = sadd.s32 %s977, %s980
          %s982 = smul.addr %s981, 8
          %s983 = scalar_lea.hbm %s8, %s982
          %s984 = sshll.u32 %s973, 4
          %s985 = int_to_ptr.vmem [resolvable:$true] %s984
          %s986 = sshll.u32 %s983, 4
          %s987 = int_to_ptr.hbm [resolvable:$true] %s986
          %992 = dma.vmem_to_hbm [thread:$0]  %s985, 256, %s987, %s970, 128, 128, 8
        $region60: #{cross_attention.1} parent=51 // pred_fallthru
          _
      $region52: #{cross_attention.1} parent=5 // pred_fallthru
        _
      %p993 = scmp.le.s32.totalorder 2, %s17
      // Predicated region
      $region61: #{cross_attention.1} parent=5 // pred_check
        %p994 = pneg %p993
      $region62: #{cross_attention.1} parent=5 // pred_check_branch
        %996 = sbr.rel (%p994) target = $region64
      $region63: #{cross_attention.1} parent=5 // pred_region
        %s997 = ssub.s32 %s17, 2
        // Predicated region
        $region65: #{cross_attention.1} parent=63 // pred_check
          %p998 = pneg %p240
        $region66: #{cross_attention.1} parent=63 // pred_check_branch
          %1000 = sbr.rel (%p998) target = $region68
        $region67: #{cross_attention.1} parent=63 // pred_region
          %s1001 = sand.u32 %s225, 1
          %s1002 = scalar_lea.sflag [#allocation6], %s1001
          %s1003 = sand.u32 %s225, 1
          %s1004 = smul.addr %s1003, 16
          %s1005 = scalar_lea.vmem [#allocation5], %s1004
          %1007 = dma.done %s1002, 256
        $region68: #{cross_attention.1} parent=63 // pred_fallthru
          _
      $region64: #{cross_attention.1} parent=5 // pred_fallthru
        _
    $region6: #{cross_attention.1} parent=1 // loop_footer
      %s21 = sadd.s32 1, %s17
    $region7: #{cross_attention.1} parent=1 // loop_footer_branch
      %16 = sbr.rel target = $region3
    $region8: #{cross_attention.1} parent=1 // loop_exit
      _
    %1008 = vsyncpa [#allocation6], 1
    %s1009 = scalar_lea.sflag [#allocation6], 1
    %1010 = vsyncpa %s1009, 1

</llo_original>
